<compile_context>
chip_gen: v6e
topology: v6e:2x2x1
jax: 0.10.0
libtpu: 0.0.40
codegen_flags: <defaults>
</compile_context>

<pallas_src>
import jax
import jax.numpy as jnp
from jax.experimental import pallas as pl
from jax.experimental.pallas import tpu as pltpu


def _round_up(x: int, m: int) -> int:
    return (x + m - 1) // m * m


def _make_agent_kernel(num_hidden_layers: int, n_act: int, compute_dtype):
    """Kernel: (Linear+ReLU)* trunk followed by a fused actor|critic head."""

    def kernel(*refs):
        # refs = [x, (w_i, b_i)*, w_head, b_head, probs_out, value_out]
        x_ref = refs[0]
        idx = 1

        h = x_ref[...]                      # bf16 tile, fed straight to the MXU
        for _ in range(num_hidden_layers):
            w_ref, b_ref = refs[idx], refs[idx + 1]
            idx += 2
            a = jnp.dot(h, w_ref[...], preferred_element_type=jnp.float32)
            a = jnp.maximum(a + b_ref[...], 0.0)        # f32 bias add + ReLU
            h = a.astype(compute_dtype)                 # carry bf16 between layers

        w_head_ref, b_head_ref = refs[idx], refs[idx + 1]
        probs_ref, value_ref = refs[idx + 2], refs[idx + 3]

        # Fused head: columns [0, n_act) = actor logits, column n_act = critic
        # value, remaining (padding) columns have zero weights/bias.
        head = jnp.dot(h, w_head_ref[...], preferred_element_type=jnp.float32)
        head = head + b_head_ref[...]

        col = jax.lax.broadcasted_iota(jnp.int32, head.shape, 1)

        # Critic value: lane-reduce the single value column, store exact f32.
        value_ref[...] = jnp.sum(
            jnp.where(col == n_act, head, 0.0), axis=-1, keepdims=True
        ).astype(value_ref.dtype)

        # Numerically stable softmax over the actor columns only (padded cols
        # get exp(-inf) = 0). Exact reciprocal (EUP divide, hidden under DMA).
        masked = jnp.where(col < n_act, head, -jnp.inf)
        m = jnp.max(masked, axis=-1, keepdims=True)
        e = jnp.exp(masked - m)
        denom = jnp.sum(e, axis=-1, keepdims=True)
        probs_ref[...] = (e * pl.reciprocal(denom)).astype(probs_ref.dtype)

    return kernel


def init_params(key, d_obs, n_act, hidden_dims):
    """PyTorch-Linear-style init (U[-1/sqrt(fan_in), 1/sqrt(fan_in)]), weights [in, out]."""
    params = {"hidden": []}
    in_dim = d_obs
    for h in hidden_dims:
        key, kw, kb = jax.random.split(key, 3)
        bound = 1.0 / jnp.sqrt(in_dim)
        w = jax.random.uniform(kw, (in_dim, h), jnp.float32, -bound, bound)
        b = jax.random.uniform(kb, (1, h), jnp.float32, -bound, bound)
        params["hidden"].append((w, b))
        in_dim = h

    key, kw, kb = jax.random.split(key, 3)
    bound = 1.0 / jnp.sqrt(in_dim)
    params["actor"] = (
        jax.random.uniform(kw, (in_dim, n_act), jnp.float32, -bound, bound),
        jax.random.uniform(kb, (1, n_act), jnp.float32, -bound, bound),
    )
    key, kw, kb = jax.random.split(key, 3)
    params["critic"] = (
        jax.random.uniform(kw, (in_dim, 1), jnp.float32, -bound, bound),
        jax.random.uniform(kb, (1, 1), jnp.float32, -bound, bound),
    )
    return params


def pack_params(params, compute_dtype=jnp.bfloat16, feature_align=128):
    """Zero-pad feature dims to lane multiples, fuse actor|critic into one head
    matrix, cast weights to the MXU compute dtype. Semantics preserved.

    feature_align: pass 256 on v6e/v7x for trunks with hidden width >= 256 so
    the K/N tile matches the 256-wide MXU; keep 128 on v5e or narrow trunks.
    """
    def pad_dim(d):
        m = feature_align if d >= feature_align else 128
        return _round_up(d, m)

    packed_hidden = []
    for (w, b) in params["hidden"]:
        i, o = w.shape
        ip, op = pad_dim(i), pad_dim(o)
        wp = jnp.zeros((ip, op), jnp.float32).at[:i, :o].set(w).astype(compute_dtype)
        bp = jnp.zeros((1, op), jnp.float32).at[:, :o].set(b)   # bias stays f32
        packed_hidden.append((wp, bp))

    wa, ba = params["actor"]
    wc, bc = params["critic"]
    h_dim, n_act = wa.shape
    hp = pad_dim(h_dim)
    n_pad = _round_up(n_act + 1, 128)   # lane-dense output slab stays 128-wide

    w_head = jnp.zeros((hp, n_pad), jnp.float32)
    w_head = w_head.at[:h_dim, :n_act].set(wa)
    w_head = w_head.at[:h_dim, n_act:n_act + 1].set(wc)
    b_head = jnp.zeros((1, n_pad), jnp.float32)
    b_head = b_head.at[:, :n_act].set(ba)
    b_head = b_head.at[:, n_act:n_act + 1].set(bc)

    return {
        "hidden": packed_hidden,
        "head": (w_head.astype(compute_dtype), b_head),
        "n_act": n_act,
        "compute_dtype": compute_dtype,
    }


def agent_forward(x, packed, *, batch_tile=512, probs_dtype=jnp.bfloat16,
                  vmem_limit_bytes=None):
    """Returns (probs [batch, n_act], value [batch, 1]).

    Best called under jit together with the downstream consumer (sampling /
    log-prob) so the input pad/cast and the output slab slices fuse away.
    """
    hidden_layers = packed["hidden"]
    w_head, b_head = packed["head"]
    n_act = packed["n_act"]
    compute_dtype = packed["compute_dtype"]

    batch, d_obs = x.shape
    d_pad = hidden_layers[0][0].shape[0] if hidden_layers else w_head.shape[0]
    n_pad = w_head.shape[1]

    # Batch tile: multiple of 16 (bf16 sublane packing). If the batch is big
    # enough, make sure the 'parallel' axis has >= 2 steps so both v7x
    # TensorCores get work (no-op on single-TC v5e/v6e).
    bp16 = _round_up(batch, 16)
    tb = min(_round_up(batch_tile, 16), bp16)
    if bp16 // tb < 2 and bp16 >= 32:
        tb = _round_up((bp16 + 1) // 2, 16)
    batch_p = _round_up(batch, tb)
    grid = (batch_p // tb,)

    # Pad + cast the activations once, in bf16 (halves input DMA); with
    # allow_input_fusion XLA can fold this pad/cast into the pallas operand.
    x_p = jnp.pad(x.astype(compute_dtype),
                  ((0, batch_p - batch), (0, d_pad - d_obs)))

    flat_inputs = [x_p]
    for (w, b) in hidden_layers:
        flat_inputs.extend([w, b])
    flat_inputs.extend([w_head, b_head])

    def build_in_specs(weight_mode):
        kw = {} if weight_mode is None else {"pipeline_mode": weight_mode}
        specs = [pl.BlockSpec((tb, d_pad), lambda i: (i, 0))]
        for (w, b) in hidden_layers:
            specs.append(pl.BlockSpec(w.shape, lambda i: (0, 0), **kw))
            specs.append(pl.BlockSpec(b.shape, lambda i: (0, 0), **kw))
        specs.append(pl.BlockSpec(w_head.shape, lambda i: (0, 0), **kw))
        specs.append(pl.BlockSpec(b_head.shape, lambda i: (0, 0), **kw))
        return specs

    out_shape = (jax.ShapeDtypeStruct((batch_p, n_pad), probs_dtype),
                 jax.ShapeDtypeStruct((batch_p, 1), jnp.float32))
    out_specs = (pl.BlockSpec((tb, n_pad), lambda i: (i, 0)),
                 pl.BlockSpec((tb, 1), lambda i: (i, 0)))

    # Auto-raise the scoped VMEM limit only when the resident weights + tiles
    # approach the default scoped limit (16 MiB on v5e). Capped at 64 MiB to
    # stay within v7x physical VMEM.
    if vmem_limit_bytes is None:
        weight_bytes = sum(int(a.size) * a.dtype.itemsize for a in flat_inputs[1:])
        max_w = max([d_pad, n_pad] + [w.shape[1] for (w, _) in hidden_layers])
        io_bytes = 2 * tb * (d_pad * jnp.dtype(compute_dtype).itemsize
                             + n_pad * jnp.dtype(probs_dtype).itemsize + 4)
        act_bytes = 3 * tb * max_w * 4
        est = 2 * weight_bytes + io_bytes + act_bytes
        if est > (12 << 20):
            vmem_limit_bytes = min(int(est * 1.25) + (2 << 20), 64 << 20)

    compiler_params = pltpu.CompilerParams(
        dimension_semantics=("parallel",),
        allow_input_fusion=[True] + [False] * (len(flat_inputs) - 1),
        vmem_limit_bytes=vmem_limit_bytes,
    )

    kernel = _make_agent_kernel(len(hidden_layers), n_act, compute_dtype)

    def call(weight_mode):
        return pl.pallas_call(
            kernel,
            grid=grid,
            in_specs=build_in_specs(weight_mode),
            out_specs=out_specs,
            out_shape=out_shape,
            compiler_params=compiler_params,
        )(*flat_inputs)

    try:
        # Grid-invariant weights/biases: single buffer (halves weight VMEM).
        probs_pad, value_pad = call(pl.Buffered(1))
    except Exception:
        # Fallback: default double-buffering if Buffered(1) is unsupported.
        probs_pad, value_pad = call(None)

    probs = probs_pad[:batch, :n_act]
    value = value_pad[:batch, :]
    return probs, value


def agent_forward_ref(x, params):
    """Pure-JAX f32 reference matching the PyTorch module."""
    h = x
    for (w, b) in params["hidden"]:
        h = jnp.maximum(h @ w + b, 0.0)
    wa, ba = params["actor"]
    wc, bc = params["critic"]
    logits = h @ wa + ba
    probs = jax.nn.softmax(logits, axis=-1)
    value = h @ wc + bc
    return probs, value


if __name__ == "__main__":
    # Small shapes consistent with the module's forward: x is [batch, d_obs].
    batch, d_obs, n_act = 8, 16, 8
    hidden_dims = [32, 32]

    key = jax.random.PRNGKey(0)
    key, kx = jax.random.split(key)
    x = jax.random.normal(kx, (batch, d_obs), dtype=jnp.float32)

    params = init_params(key, d_obs, n_act, hidden_dims)
    packed = pack_params(params, compute_dtype=jnp.bfloat16)

    probs, value = agent_forward(x, packed)
    jax.block_until_ready((probs, value))

    probs_ref, value_ref = agent_forward_ref(x, params)
    assert probs.shape == (batch, n_act)
    assert value.shape == (batch, 1)
    # bf16 weights/activations on the MXU (f32 accumulate), bf16 probs slab ->
    # loosened tolerance vs. the f32 reference.
    assert jnp.allclose(probs.astype(jnp.float32), probs_ref, atol=3e-2, rtol=3e-2)
    assert jnp.allclose(value, value_ref, atol=3e-2, rtol=3e-2)
    # Exact reciprocal in the softmax; rows sum to 1 within bf16 rounding.
    assert jnp.allclose(jnp.sum(probs.astype(jnp.float32), axis=-1), 1.0, atol=1e-2)
    assert bool(jnp.all(probs >= 0.0))

    print("KERNEL_OK")
</pallas_src>

<mosaic_0001>
module attributes {stable_mosaic.version = 11 : i64} {
  func.func @kernel(%arg0: i32, %arg1: memref<16x128xbf16, #tpu.memory_space<vmem>>, %arg2: memref<128x128xbf16, #tpu.memory_space<vmem>>, %arg3: memref<1x128xf32, #tpu.memory_space<vmem>>, %arg4: memref<128x128xbf16, #tpu.memory_space<vmem>>, %arg5: memref<1x128xf32, #tpu.memory_space<vmem>>, %arg6: memref<128x128xbf16, #tpu.memory_space<vmem>>, %arg7: memref<1x128xf32, #tpu.memory_space<vmem>>, %arg8: memref<16x128xbf16, #tpu.memory_space<vmem>>, %arg9: memref<16x1xf32, #tpu.memory_space<vmem>>) attributes {dimension_semantics = [#tpu.dimension_semantics<parallel>], iteration_bounds = array<i64: 1>, scalar_prefetch = 0 : i64, scratch_operands = 0 : i64, tpu.core_type = #tpu.core_type<tc>, window_params = [{transform_indices = @transform_0, window_bounds = array<i64: 16, 128>}, {pipeline_mode = #tpu.pipeline_mode<synchronous>, transform_indices = @transform_1, window_bounds = array<i64: 128, 128>}, {pipeline_mode = #tpu.pipeline_mode<synchronous>, transform_indices = @transform_2, window_bounds = array<i64: 1, 128>}, {pipeline_mode = #tpu.pipeline_mode<synchronous>, transform_indices = @transform_3, window_bounds = array<i64: 128, 128>}, {pipeline_mode = #tpu.pipeline_mode<synchronous>, transform_indices = @transform_4, window_bounds = array<i64: 1, 128>}, {pipeline_mode = #tpu.pipeline_mode<synchronous>, transform_indices = @transform_5, window_bounds = array<i64: 128, 128>}, {pipeline_mode = #tpu.pipeline_mode<synchronous>, transform_indices = @transform_6, window_bounds = array<i64: 1, 128>}, {transform_indices = @transform_7, window_bounds = array<i64: 16, 128>}, {transform_indices = @transform_8, window_bounds = array<i64: 16, 1>}]} {
    %c0 = arith.constant 0 : index
    %c0_0 = arith.constant 0 : index
    %0 = vector.load %arg1[%c0, %c0_0] : memref<16x128xbf16, #tpu.memory_space<vmem>>, vector<16x128xbf16>
    %c0_1 = arith.constant 0 : index
    %c0_2 = arith.constant 0 : index
    %1 = vector.load %arg2[%c0_1, %c0_2] : memref<128x128xbf16, #tpu.memory_space<vmem>>, vector<128x128xbf16>
    %cst = arith.constant dense<0.000000e+00> : vector<16x128xf32>
    %2 = tpu.matmul %0, %1, %cst {dimension_numbers = #tpu.dot_dimension_numbers<[1], [0], [0], [1], [0, 0, 1, 1], [], []>} : vector<16x128xbf16>, vector<128x128xbf16>, vector<16x128xf32> -> vector<16x128xf32>
    %c0_3 = arith.constant 0 : index
    %c0_4 = arith.constant 0 : index
    %3 = vector.load %arg3[%c0_3, %c0_4] : memref<1x128xf32, #tpu.memory_space<vmem>>, vector<1x128xf32>
    %4 = vector.broadcast %3 : vector<1x128xf32> to vector<16x128xf32>
    %5 = arith.addf %2, %4 : vector<16x128xf32>
    %cst_5 = arith.constant 0.000000e+00 : f32
    %6 = vector.broadcast %cst_5 : f32 to vector<16x128xf32>
    %7 = arith.maximumf %5, %6 : vector<16x128xf32>
    %8 = arith.truncf %7 : vector<16x128xf32> to vector<16x128xbf16>
    %c0_6 = arith.constant 0 : index
    %c0_7 = arith.constant 0 : index
    %9 = vector.load %arg4[%c0_6, %c0_7] : memref<128x128xbf16, #tpu.memory_space<vmem>>, vector<128x128xbf16>
    %cst_8 = arith.constant dense<0.000000e+00> : vector<16x128xf32>
    %10 = tpu.matmul %8, %9, %cst_8 {dimension_numbers = #tpu.dot_dimension_numbers<[1], [0], [0], [1], [0, 0, 1, 1], [], []>} : vector<16x128xbf16>, vector<128x128xbf16>, vector<16x128xf32> -> vector<16x128xf32>
    %c0_9 = arith.constant 0 : index
    %c0_10 = arith.constant 0 : index
    %11 = vector.load %arg5[%c0_9, %c0_10] : memref<1x128xf32, #tpu.memory_space<vmem>>, vector<1x128xf32>
    %12 = vector.broadcast %11 : vector<1x128xf32> to vector<16x128xf32>
    %13 = arith.addf %10, %12 : vector<16x128xf32>
    %cst_11 = arith.constant 0.000000e+00 : f32
    %14 = vector.broadcast %cst_11 : f32 to vector<16x128xf32>
    %15 = arith.maximumf %13, %14 : vector<16x128xf32>
    %16 = arith.truncf %15 : vector<16x128xf32> to vector<16x128xbf16>
    %c0_12 = arith.constant 0 : index
    %c0_13 = arith.constant 0 : index
    %17 = vector.load %arg6[%c0_12, %c0_13] : memref<128x128xbf16, #tpu.memory_space<vmem>>, vector<128x128xbf16>
    %cst_14 = arith.constant dense<0.000000e+00> : vector<16x128xf32>
    %18 = tpu.matmul %16, %17, %cst_14 {dimension_numbers = #tpu.dot_dimension_numbers<[1], [0], [0], [1], [0, 0, 1, 1], [], []>} : vector<16x128xbf16>, vector<128x128xbf16>, vector<16x128xf32> -> vector<16x128xf32>
    %c0_15 = arith.constant 0 : index
    %c0_16 = arith.constant 0 : index
    %19 = vector.load %arg7[%c0_15, %c0_16] : memref<1x128xf32, #tpu.memory_space<vmem>>, vector<1x128xf32>
    %20 = vector.broadcast %19 : vector<1x128xf32> to vector<16x128xf32>
    %21 = arith.addf %18, %20 : vector<16x128xf32>
    %22 = tpu.iota {dimensions = array<i32: 1>} : vector<16x128xi32>
    %c8_i32 = arith.constant 8 : i32
    %23 = vector.broadcast %c8_i32 : i32 to vector<16x128xi32>
    %24 = arith.cmpi eq, %22, %23 : vector<16x128xi32>
    %cst_17 = arith.constant 0.000000e+00 : f32
    %25 = vector.broadcast %cst_17 : f32 to vector<16x128xf32>
    %26 = arith.select %24, %21, %25 : vector<16x128xi1>, vector<16x128xf32>
    %cst_18 = arith.constant dense<0.000000e+00> : vector<16xf32>
    %27 = vector.multi_reduction <add>, %26, %cst_18 [1] : vector<16x128xf32> to vector<16xf32>
    %28 = vector.shape_cast %27 : vector<16xf32> to vector<16x1xf32>
    %c0_19 = arith.constant 0 : index
    %c0_20 = arith.constant 0 : index
    %29 = vector.load %arg9[%c0_19, %c0_20] : memref<16x1xf32, #tpu.memory_space<vmem>>, vector<16x1xf32>
    tpu.vector_store %arg9[%c0_19, %c0_20], %28 {strides = array<i32>} : memref<16x1xf32, #tpu.memory_space<vmem>>, vector<16x1xf32>,
    %c8_i32_21 = arith.constant 8 : i32
    %30 = vector.broadcast %c8_i32_21 : i32 to vector<16x128xi32>
    %31 = arith.cmpi slt, %22, %30 : vector<16x128xi32>
    %cst_22 = arith.constant 0xFF800000 : f32
    %32 = vector.broadcast %cst_22 : f32 to vector<16x128xf32>
    %33 = arith.select %31, %21, %32 : vector<16x128xi1>, vector<16x128xf32>
    %cst_23 = arith.constant dense<0xFF800000> : vector<16xf32>
    %34 = vector.multi_reduction <maximumf>, %33, %cst_23 [1] : vector<16x128xf32> to vector<16xf32>
    %35 = vector.shape_cast %34 : vector<16xf32> to vector<16x1xf32>
    %36 = vector.broadcast %35 : vector<16x1xf32> to vector<16x128xf32>
    %37 = arith.subf %33, %36 : vector<16x128xf32>
    %38 = math.exp %37 : vector<16x128xf32>
    %cst_24 = arith.constant dense<0.000000e+00> : vector<16xf32>
    %39 = vector.multi_reduction <add>, %38, %cst_24 [1] : vector<16x128xf32> to vector<16xf32>
    %40 = vector.shape_cast %39 : vector<16xf32> to vector<16x1xf32>
    %41 = tpu.reciprocal %40 : vector<16x1xf32> -> vector<16x1xf32>
    %42 = vector.broadcast %41 : vector<16x1xf32> to vector<16x128xf32>
    %43 = arith.mulf %38, %42 : vector<16x128xf32>
    %44 = arith.truncf %43 : vector<16x128xf32> to vector<16x128xbf16>
    %c0_25 = arith.constant 0 : index
    %c0_26 = arith.constant 0 : index
    %45 = vector.load %arg8[%c0_25, %c0_26] : memref<16x128xbf16, #tpu.memory_space<vmem>>, vector<16x128xbf16>
    tpu.vector_store %arg8[%c0_25, %c0_26], %44 {strides = array<i32>} : memref<16x128xbf16, #tpu.memory_space<vmem>>, vector<16x128xbf16>,
    return
  }
  func.func @transform_0(%arg0: i32) -> (i32, i32) {
    %c0_i32 = arith.constant 0 : i32
    %c0_i32_0 = arith.constant 0 : i32
    return %arg0, %c0_i32 : i32, i32
  }
  func.func @transform_1(%arg0: i32) -> (i32, i32) {
    %c0_i32 = arith.constant 0 : i32
    %c0_i32_0 = arith.constant 0 : i32
    %c0_i32_1 = arith.constant 0 : i32
    return %c0_i32, %c0_i32_0 : i32, i32
  }
  func.func @transform_2(%arg0: i32) -> (i32, i32) {
    %c0_i32 = arith.constant 0 : i32
    %c0_i32_0 = arith.constant 0 : i32
    %c0_i32_1 = arith.constant 0 : i32
    return %c0_i32, %c0_i32_0 : i32, i32
  }
  func.func @transform_3(%arg0: i32) -> (i32, i32) {
    %c0_i32 = arith.constant 0 : i32
    %c0_i32_0 = arith.constant 0 : i32
    %c0_i32_1 = arith.constant 0 : i32
    return %c0_i32, %c0_i32_0 : i32, i32
  }
  func.func @transform_4(%arg0: i32) -> (i32, i32) {
    %c0_i32 = arith.constant 0 : i32
    %c0_i32_0 = arith.constant 0 : i32
    %c0_i32_1 = arith.constant 0 : i32
    return %c0_i32, %c0_i32_0 : i32, i32
  }
  func.func @transform_5(%arg0: i32) -> (i32, i32) {
    %c0_i32 = arith.constant 0 : i32
    %c0_i32_0 = arith.constant 0 : i32
    %c0_i32_1 = arith.constant 0 : i32
    return %c0_i32, %c0_i32_0 : i32, i32
  }
  func.func @transform_6(%arg0: i32) -> (i32, i32) {
    %c0_i32 = arith.constant 0 : i32
    %c0_i32_0 = arith.constant 0 : i32
    %c0_i32_1 = arith.constant 0 : i32
    return %c0_i32, %c0_i32_0 : i32, i32
  }
  func.func @transform_7(%arg0: i32) -> (i32, i32) {
    %c0_i32 = arith.constant 0 : i32
    %c0_i32_0 = arith.constant 0 : i32
    return %arg0, %c0_i32 : i32, i32
  }
  func.func @transform_8(%arg0: i32) -> (i32, i32) {
    %c0_i32 = arith.constant 0 : i32
    %c0_i32_0 = arith.constant 0 : i32
    return %arg0, %c0_i32 : i32, i32
  }
}

module attributes {stable_mosaic.version = 11 : i64} {
  func.func @kernel(%arg0: i32, %arg1: memref<16x128xbf16, #tpu.memory_space<vmem>>, %arg2: memref<128x128xbf16, #tpu.memory_space<vmem>>, %arg3: memref<1x128xf32, #tpu.memory_space<vmem>>, %arg4: memref<128x128xbf16, #tpu.memory_space<vmem>>, %arg5: memref<1x128xf32, #tpu.memory_space<vmem>>, %arg6: memref<128x128xbf16, #tpu.memory_space<vmem>>, %arg7: memref<1x128xf32, #tpu.memory_space<vmem>>, %arg8: memref<16x128xbf16, #tpu.memory_space<vmem>>, %arg9: memref<16x1xf32, #tpu.memory_space<vmem>>) attributes {dimension_semantics = [#tpu.dimension_semantics<parallel>], iteration_bounds = array<i64: 1>, scalar_prefetch = 0 : i64, scratch_operands = 0 : i64, tpu.core_type = #tpu.core_type<tc>, window_params = [{transform_indices = @transform_0, window_bounds = array<i64: 16, 128>}, {pipeline_mode = #tpu.pipeline_mode<synchronous>, transform_indices = @transform_1, window_bounds = array<i64: 128, 128>}, {pipeline_mode = #tpu.pipeline_mode<synchronous>, transform_indices = @transform_2, window_bounds = array<i64: 1, 128>}, {pipeline_mode = #tpu.pipeline_mode<synchronous>, transform_indices = @transform_3, window_bounds = array<i64: 128, 128>}, {pipeline_mode = #tpu.pipeline_mode<synchronous>, transform_indices = @transform_4, window_bounds = array<i64: 1, 128>}, {pipeline_mode = #tpu.pipeline_mode<synchronous>, transform_indices = @transform_5, window_bounds = array<i64: 128, 128>}, {pipeline_mode = #tpu.pipeline_mode<synchronous>, transform_indices = @transform_6, window_bounds = array<i64: 1, 128>}, {transform_indices = @transform_7, window_bounds = array<i64: 16, 128>}, {transform_indices = @transform_8, window_bounds = array<i64: 16, 1>}]} {
    %c0 = arith.constant 0 : index
    %c0_0 = arith.constant 0 : index
    %0 = vector.load %arg1[%c0, %c0_0] : memref<16x128xbf16, #tpu.memory_space<vmem>>, vector<16x128xbf16>
    %c0_1 = arith.constant 0 : index
    %c0_2 = arith.constant 0 : index
    %1 = vector.load %arg2[%c0_1, %c0_2] : memref<128x128xbf16, #tpu.memory_space<vmem>>, vector<128x128xbf16>
    %cst = arith.constant dense<0.000000e+00> : vector<16x128xf32>
    %2 = tpu.matmul %0, %1, %cst {dimension_numbers = #tpu.dot_dimension_numbers<[1], [0], [0], [1], [0, 0, 1, 1], [], []>} : vector<16x128xbf16>, vector<128x128xbf16>, vector<16x128xf32> -> vector<16x128xf32>
    %c0_3 = arith.constant 0 : index
    %c0_4 = arith.constant 0 : index
    %3 = vector.load %arg3[%c0_3, %c0_4] : memref<1x128xf32, #tpu.memory_space<vmem>>, vector<1x128xf32>
    %4 = vector.broadcast %3 : vector<1x128xf32> to vector<16x128xf32>
    %5 = arith.addf %2, %4 : vector<16x128xf32>
    %cst_5 = arith.constant 0.000000e+00 : f32
    %6 = vector.broadcast %cst_5 : f32 to vector<16x128xf32>
    %7 = arith.maximumf %5, %6 : vector<16x128xf32>
    %8 = arith.truncf %7 : vector<16x128xf32> to vector<16x128xbf16>
    %c0_6 = arith.constant 0 : index
    %c0_7 = arith.constant 0 : index
    %9 = vector.load %arg4[%c0_6, %c0_7] : memref<128x128xbf16, #tpu.memory_space<vmem>>, vector<128x128xbf16>
    %cst_8 = arith.constant dense<0.000000e+00> : vector<16x128xf32>
    %10 = tpu.matmul %8, %9, %cst_8 {dimension_numbers = #tpu.dot_dimension_numbers<[1], [0], [0], [1], [0, 0, 1, 1], [], []>} : vector<16x128xbf16>, vector<128x128xbf16>, vector<16x128xf32> -> vector<16x128xf32>
    %c0_9 = arith.constant 0 : index
    %c0_10 = arith.constant 0 : index
    %11 = vector.load %arg5[%c0_9, %c0_10] : memref<1x128xf32, #tpu.memory_space<vmem>>, vector<1x128xf32>
    %12 = vector.broadcast %11 : vector<1x128xf32> to vector<16x128xf32>
    %13 = arith.addf %10, %12 : vector<16x128xf32>
    %cst_11 = arith.constant 0.000000e+00 : f32
    %14 = vector.broadcast %cst_11 : f32 to vector<16x128xf32>
    %15 = arith.maximumf %13, %14 : vector<16x128xf32>
    %16 = arith.truncf %15 : vector<16x128xf32> to vector<16x128xbf16>
    %c0_12 = arith.constant 0 : index
    %c0_13 = arith.constant 0 : index
    %17 = vector.load %arg6[%c0_12, %c0_13] : memref<128x128xbf16, #tpu.memory_space<vmem>>, vector<128x128xbf16>
    %cst_14 = arith.constant dense<0.000000e+00> : vector<16x128xf32>
    %18 = tpu.matmul %16, %17, %cst_14 {dimension_numbers = #tpu.dot_dimension_numbers<[1], [0], [0], [1], [0, 0, 1, 1], [], []>} : vector<16x128xbf16>, vector<128x128xbf16>, vector<16x128xf32> -> vector<16x128xf32>
    %c0_15 = arith.constant 0 : index
    %c0_16 = arith.constant 0 : index
    %19 = vector.load %arg7[%c0_15, %c0_16] : memref<1x128xf32, #tpu.memory_space<vmem>>, vector<1x128xf32>
    %20 = vector.broadcast %19 : vector<1x128xf32> to vector<16x128xf32>
    %21 = arith.addf %18, %20 : vector<16x128xf32>
    %22 = tpu.iota {dimensions = array<i32: 1>} : vector<16x128xi32>
    %c8_i32 = arith.constant 8 : i32
    %23 = vector.broadcast %c8_i32 : i32 to vector<16x128xi32>
    %24 = arith.cmpi eq, %22, %23 : vector<16x128xi32>
    %cst_17 = arith.constant 0.000000e+00 : f32
    %25 = vector.broadcast %cst_17 : f32 to vector<16x128xf32>
    %26 = arith.select %24, %21, %25 : vector<16x128xi1>, vector<16x128xf32>
    %cst_18 = arith.constant dense<0.000000e+00> : vector<16xf32>
    %27 = vector.multi_reduction <add>, %26, %cst_18 [1] : vector<16x128xf32> to vector<16xf32>
    %28 = vector.shape_cast %27 : vector<16xf32> to vector<16x1xf32>
    %c0_19 = arith.constant 0 : index
    %c0_20 = arith.constant 0 : index
    %29 = vector.load %arg9[%c0_19, %c0_20] : memref<16x1xf32, #tpu.memory_space<vmem>>, vector<16x1xf32>
    tpu.vector_store %arg9[%c0_19, %c0_20], %28 {strides = array<i32>} : memref<16x1xf32, #tpu.memory_space<vmem>>, vector<16x1xf32>,
    %c8_i32_21 = arith.constant 8 : i32
    %30 = vector.broadcast %c8_i32_21 : i32 to vector<16x128xi32>
    %31 = arith.cmpi slt, %22, %30 : vector<16x128xi32>
    %cst_22 = arith.constant 0xFF800000 : f32
    %32 = vector.broadcast %cst_22 : f32 to vector<16x128xf32>
    %33 = arith.select %31, %21, %32 : vector<16x128xi1>, vector<16x128xf32>
    %cst_23 = arith.constant dense<0xFF800000> : vector<16xf32>
    %34 = vector.multi_reduction <maximumf>, %33, %cst_23 [1] : vector<16x128xf32> to vector<16xf32>
    %35 = vector.shape_cast %34 : vector<16xf32> to vector<16x1xf32>
    %36 = vector.broadcast %35 : vector<16x1xf32> to vector<16x128xf32>
    %37 = arith.subf %33, %36 : vector<16x128xf32>
    %38 = math.exp %37 : vector<16x128xf32>
    %cst_24 = arith.constant dense<0.000000e+00> : vector<16xf32>
    %39 = vector.multi_reduction <add>, %38, %cst_24 [1] : vector<16x128xf32> to vector<16xf32>
    %40 = vector.shape_cast %39 : vector<16xf32> to vector<16x1xf32>
    %41 = tpu.reciprocal %40 : vector<16x1xf32> -> vector<16x1xf32>
    %42 = vector.broadcast %41 : vector<16x1xf32> to vector<16x128xf32>
    %43 = arith.mulf %38, %42 : vector<16x128xf32>
    %44 = arith.truncf %43 : vector<16x128xf32> to vector<16x128xbf16>
    %c0_25 = arith.constant 0 : index
    %c0_26 = arith.constant 0 : index
    %45 = vector.load %arg8[%c0_25, %c0_26] : memref<16x128xbf16, #tpu.memory_space<vmem>>, vector<16x128xbf16>
    tpu.vector_store %arg8[%c0_25, %c0_26], %44 {strides = array<i32>} : memref<16x128xbf16, #tpu.memory_space<vmem>>, vector<16x128xbf16>,
    return
  }
  func.func @transform_0(%arg0: i32) -> (i32, i32) {
    %c0_i32 = arith.constant 0 : i32
    %c0_i32_0 = arith.constant 0 : i32
    return %arg0, %c0_i32 : i32, i32
  }
  func.func @transform_1(%arg0: i32) -> (i32, i32) {
    %c0_i32 = arith.constant 0 : i32
    %c0_i32_0 = arith.constant 0 : i32
    %c0_i32_1 = arith.constant 0 : i32
    return %c0_i32, %c0_i32_0 : i32, i32
  }
  func.func @transform_2(%arg0: i32) -> (i32, i32) {
    %c0_i32 = arith.constant 0 : i32
    %c0_i32_0 = arith.constant 0 : i32
    %c0_i32_1 = arith.constant 0 : i32
    return %c0_i32, %c0_i32_0 : i32, i32
  }
  func.func @transform_3(%arg0: i32) -> (i32, i32) {
    %c0_i32 = arith.constant 0 : i32
    %c0_i32_0 = arith.constant 0 : i32
    %c0_i32_1 = arith.constant 0 : i32
    return %c0_i32, %c0_i32_0 : i32, i32
  }
  func.func @transform_4(%arg0: i32) -> (i32, i32) {
    %c0_i32 = arith.constant 0 : i32
    %c0_i32_0 = arith.constant 0 : i32
    %c0_i32_1 = arith.constant 0 : i32
    return %c0_i32, %c0_i32_0 : i32, i32
  }
  func.func @transform_5(%arg0: i32) -> (i32, i32) {
    %c0_i32 = arith.constant 0 : i32
    %c0_i32_0 = arith.constant 0 : i32
    %c0_i32_1 = arith.constant 0 : i32
    return %c0_i32, %c0_i32_0 : i32, i32
  }
  func.func @transform_6(%arg0: i32) -> (i32, i32) {
    %c0_i32 = arith.constant 0 : i32
    %c0_i32_0 = arith.constant 0 : i32
    %c0_i32_1 = arith.constant 0 : i32
    return %c0_i32, %c0_i32_0 : i32, i32
  }
  func.func @transform_7(%arg0: i32) -> (i32, i32) {
    %c0_i32 = arith.constant 0 : i32
    %c0_i32_0 = arith.constant 0 : i32
    return %arg0, %c0_i32 : i32, i32
  }
  func.func @transform_8(%arg0: i32) -> (i32, i32) {
    %c0_i32 = arith.constant 0 : i32
    %c0_i32_0 = arith.constant 0 : i32
    return %arg0, %c0_i32 : i32, i32
  }
}

</mosaic_0001>

<llo_original>
// kernel: tpu_custom_call.1
$region0: #{tpu_custom_call.1}
  #allocation0 [shape = 'u32[]', space=smem, size = 0x4, offset = 0x4, fixed_abs, tag = 'smem constant byte address 0x4 - core index']
  #allocation1 [shape = 'u32[144,128]{1,0:T(1,128)}', space=vmem, size = 0x12000, scoped, tag = 'internal scratch']
  %s0 = inlined_call_operand.hbm [shape: bf16[16,128], index: 0, kind: input, shape index: {}]
  %s1 = inlined_call_operand.hbm [shape: bf16[128,128], index: 1, kind: input, shape index: {}]
  %s2 = inlined_call_operand.vmem [shape: f32[1,128], index: 2, kind: input, shape index: {}]
  %s3 = inlined_call_operand.hbm [shape: bf16[128,128], index: 3, kind: input, shape index: {}]
  %s4 = inlined_call_operand.vmem [shape: f32[1,128], index: 4, kind: input, shape index: {}]
  %s5 = inlined_call_operand.hbm [shape: bf16[128,128], index: 5, kind: input, shape index: {}]
  %s6 = inlined_call_operand.vmem [shape: f32[1,128], index: 6, kind: input, shape index: {}]
  %s7 = inlined_call_operand.hbm [shape: bf16[16,128], index: 7, kind: output, shape index: {0}]
  %s8 = inlined_call_operand.vmem [shape: f32[16,1], index: 8, kind: output, shape index: {1}]
  %9 = xla_tuple %s7, %s8
  %s10 = sld [smem:[#allocation0]]
  $region62: #{tpu_custom_call.1} parent=0
    _
  %s12 = ssub.s32 1, %s10
  %s13 = scalar_select 0, %s12, %s10
  $region1: #{tpu_custom_call.1} parent=0
    #allocation2 [shape = 'u8[4096]{0}', space=vmem, size = 0x1000, scoped, tag = 'input window, operand 0, single buffered']
    #allocation3 [shape = 's32[1]{0}', space=sflag, size = 0x4, scoped, tag = 'scoped memory for tpu_custom_call.1']
    #allocation4 [shape = 's32[1]{0}', space=sflag, size = 0x4, scoped, tag = 'scoped memory for tpu_custom_call.1']
    #allocation5 [shape = 'u8[32768]{0}', space=vmem, size = 0x8000, scoped, tag = 'input window, operand 1, single buffered']
    #allocation6 [shape = 's32[1]{0}', space=sflag, size = 0x4, scoped, tag = 'scoped memory for tpu_custom_call.1']
    #allocation7 [shape = 'u8[32768]{0}', space=vmem, size = 0x8000, scoped, tag = 'input window, operand 3, single buffered']
    #allocation8 [shape = 'u8[32768]{0}', space=vmem, size = 0x8000, scoped, tag = 'input window, operand 5, single buffered']
    #allocation9 [shape = 's32[1]{0}', space=sflag, size = 0x4, scoped, tag = 'scoped memory for tpu_custom_call.1']
    #allocation10 [shape = 'u8[4096]{0}', space=vmem, size = 0x1000, scoped, tag = 'output window, operand 0, single buffered']
    %14 = vsyncpa [#allocation3], 0
    %15 = vsyncpa [#allocation6], 0
    %16 = vsyncpa [#allocation9], 0
    %17 = vsyncpa [#allocation4], 0
    // Predicated region
    $region2: #{tpu_custom_call.1} parent=1 // pred_check
      _
    $region3: #{tpu_custom_call.1} parent=1 // pred_check_branch
      %19 = sbr.rel (0) target = $region5
    $region4: #{tpu_custom_call.1} parent=1 // pred_region
      %s21 = ssub.s32 128, 128
      %22 = vsyncadd [#allocation3], %s21
      %s23 = sshll.u32 [#allocation2], 4
      %s24 = int_to_ptr.vmem [resolvable:$true] %s23
      %29 = dma.hbm_to_vmem [thread:$0]  %s0, 128, %s24, [#allocation3], 64, 64, 4
    $region5: #{tpu_custom_call.1} parent=1 // pred_fallthru
      _
    // Predicated region
    $region6: #{tpu_custom_call.1} parent=1 // pred_check
      _
    $region7: #{tpu_custom_call.1} parent=1 // pred_check_branch
      %31 = sbr.rel (0) target = $region9
    $region8: #{tpu_custom_call.1} parent=1 // pred_region
      %s33 = ssub.s32 1024, 1024
      %34 = vsyncadd [#allocation6], %s33
      %s35 = sshll.u32 [#allocation5], 4
      %s36 = int_to_ptr.vmem [resolvable:$true] %s35
      %41 = dma.hbm_to_vmem [thread:$0]  %s1, 1024, %s36, [#allocation6], 64, 64, 4
    $region9: #{tpu_custom_call.1} parent=1 // pred_fallthru
      _
    // Predicated region
    $region10: #{tpu_custom_call.1} parent=1 // pred_check
      _
    $region11: #{tpu_custom_call.1} parent=1 // pred_check_branch
      %43 = sbr.rel (0) target = $region13
    $region12: #{tpu_custom_call.1} parent=1 // pred_region
      _
    $region13: #{tpu_custom_call.1} parent=1 // pred_fallthru
      _
    // Predicated region
    $region14: #{tpu_custom_call.1} parent=1 // pred_check
      _
    $region15: #{tpu_custom_call.1} parent=1 // pred_check_branch
      %45 = sbr.rel (0) target = $region17
    $region16: #{tpu_custom_call.1} parent=1 // pred_region
      %s47 = ssub.s32 1024, 1024
      %48 = vsyncadd [#allocation6], %s47
      %s49 = sshll.u32 [#allocation7], 4
      %s50 = int_to_ptr.vmem [resolvable:$true] %s49
      %55 = dma.hbm_to_vmem [thread:$0]  %s3, 1024, %s50, [#allocation6], 64, 64, 4
    $region17: #{tpu_custom_call.1} parent=1 // pred_fallthru
      _
    // Predicated region
    $region18: #{tpu_custom_call.1} parent=1 // pred_check
      _
    $region19: #{tpu_custom_call.1} parent=1 // pred_check_branch
      %57 = sbr.rel (0) target = $region21
    $region20: #{tpu_custom_call.1} parent=1 // pred_region
      _
    $region21: #{tpu_custom_call.1} parent=1 // pred_fallthru
      _
    // Predicated region
    $region22: #{tpu_custom_call.1} parent=1 // pred_check
      _
    $region23: #{tpu_custom_call.1} parent=1 // pred_check_branch
      %59 = sbr.rel (0) target = $region25
    $region24: #{tpu_custom_call.1} parent=1 // pred_region
      %s61 = ssub.s32 1024, 1024
      %62 = vsyncadd [#allocation9], %s61
      %s63 = sshll.u32 [#allocation8], 4
      %s64 = int_to_ptr.vmem [resolvable:$true] %s63
      %69 = dma.hbm_to_vmem [thread:$0]  %s5, 1024, %s64, [#allocation9], 64, 64, 4
    $region25: #{tpu_custom_call.1} parent=1 // pred_fallthru
      _
    // Predicated region
    $region26: #{tpu_custom_call.1} parent=1 // pred_check
      _
    $region27: #{tpu_custom_call.1} parent=1 // pred_check_branch
      %71 = sbr.rel (0) target = $region29
    $region28: #{tpu_custom_call.1} parent=1 // pred_region
      _
    $region29: #{tpu_custom_call.1} parent=1 // pred_fallthru
      _
    // Predicated region
    $region30: #{tpu_custom_call.1} parent=1 // pred_check
      _
    $region31: #{tpu_custom_call.1} parent=1 // pred_check_branch
      %73 = sbr.rel (0) target = $region33
    $region32: #{tpu_custom_call.1} parent=1 // pred_region
      %74 = dma.done [#allocation3], 128
    $region33: #{tpu_custom_call.1} parent=1 // pred_fallthru
      _
    // Predicated region
    $region34: #{tpu_custom_call.1} parent=1 // pred_check
      _
    $region35: #{tpu_custom_call.1} parent=1 // pred_check_branch
      %76 = sbr.rel (0) target = $region37
    $region36: #{tpu_custom_call.1} parent=1 // pred_region
      %77 = dma.done [#allocation6], 1024
    $region37: #{tpu_custom_call.1} parent=1 // pred_fallthru
      _
    // Predicated region
    $region38: #{tpu_custom_call.1} parent=1 // pred_check
      _
    $region39: #{tpu_custom_call.1} parent=1 // pred_check_branch
      %79 = sbr.rel (0) target = $region41
    $region40: #{tpu_custom_call.1} parent=1 // pred_region
      %80 = dma.done [#allocation6], 1024
    $region41: #{tpu_custom_call.1} parent=1 // pred_fallthru
      _
    // Predicated region
    $region42: #{tpu_custom_call.1} parent=1 // pred_check
      _
    $region43: #{tpu_custom_call.1} parent=1 // pred_check_branch
      %82 = sbr.rel (0) target = $region45
    $region44: #{tpu_custom_call.1} parent=1 // pred_region
      %83 = dma.done [#allocation9], 1024
    $region45: #{tpu_custom_call.1} parent=1 // pred_fallthru
      _
    %v85 = vld [vmem:[#allocation2] sm:$0xf]
    %v86 = vld [vmem:[#allocation2 + $0x4] sm:$0xf]
    %v87 = vld [vmem:[#allocation5] sm:$0xf]
    %v88 = vld [vmem:[#allocation5 + $0x4] sm:$0xf]
    %v89 = vld [vmem:[#allocation5 + $0x8] sm:$0xf]
    %v90 = vld [vmem:[#allocation5 + $0xc] sm:$0xf]
    %v91 = vld [vmem:[#allocation5 + $0x10] sm:$0xf]
    %v92 = vld [vmem:[#allocation5 + $0x14] sm:$0xf]
    %v93 = vld [vmem:[#allocation5 + $0x18] sm:$0xf]
    %v94 = vld [vmem:[#allocation5 + $0x1c] sm:$0xf]
    %v95 = vld [vmem:[#allocation5 + $0x20] sm:$0xf]
    %v96 = vld [vmem:[#allocation5 + $0x24] sm:$0xf]
    %v97 = vld [vmem:[#allocation5 + $0x28] sm:$0xf]
    %v98 = vld [vmem:[#allocation5 + $0x2c] sm:$0xf]
    %v99 = vld [vmem:[#allocation5 + $0x30] sm:$0xf]
    %v100 = vld [vmem:[#allocation5 + $0x34] sm:$0xf]
    %v101 = vld [vmem:[#allocation5 + $0x38] sm:$0xf]
    %v102 = vld [vmem:[#allocation5 + $0x3c] sm:$0xf]
    %v103 = vld [vmem:[%s2] sm:$0x1]
    %v105 = vlaneseq
    %v106 = vshrl.u32 %v105, 7
    %v107 = vsub.s32 0, %v106
    %v108 = vrot.slane %v103, %v107
    %v112 = vunpack.c.l.b16 %v85
    %v113 = vunpack.c.l.b16 %v86
    %v114 = vpack.c.b16 %v113, %v112
    %v132 = vunpack.c.l.b16 %v87
    %v133 = vunpack.c.l.b16 %v88
    %v134 = vunpack.c.l.b16 %v89
    %v135 = vunpack.c.l.b16 %v90
    %v136 = vunpack.c.l.b16 %v91
    %v137 = vunpack.c.l.b16 %v92
    %v138 = vunpack.c.l.b16 %v93
    %v139 = vunpack.c.l.b16 %v94
    %v140 = vunpack.c.l.b16 %v95
    %v141 = vunpack.c.l.b16 %v96
    %v142 = vunpack.c.l.b16 %v97
    %v143 = vunpack.c.l.b16 %v98
    %v144 = vunpack.c.l.b16 %v99
    %v145 = vunpack.c.l.b16 %v100
    %v146 = vunpack.c.l.b16 %v101
    %v147 = vunpack.c.l.b16 %v102
    %v148 = vpack.c.b16 %v133, %v132
    %v149 = vpack.c.b16 %v135, %v134
    %v150 = vpack.c.b16 %v137, %v136
    %v151 = vpack.c.b16 %v139, %v138
    %v152 = vpack.c.b16 %v141, %v140
    %v153 = vpack.c.b16 %v143, %v142
    %v154 = vpack.c.b16 %v145, %v144
    %v155 = vpack.c.b16 %v147, %v146
    %164 = vmatprep.subr.bf16.mxu0 0
    %165 = vmatpush1.bf16.msra.mxu0 %v155
    %166 = vmatprep.subr.bf16.mxu0 0
    %167 = vmatpush1.bf16.msra.mxu0 %v154
    %168 = vmatprep.subr.bf16.mxu0 0
    %169 = vmatpush1.bf16.msra.mxu0 %v153
    %170 = vmatprep.subr.bf16.mxu0 0
    %171 = vmatpush1.bf16.msra.mxu0 %v152
    %172 = vmatprep.subr.bf16.mxu0 0
    %173 = vmatpush1.bf16.msra.mxu0 %v151
    %174 = vmatprep.subr.bf16.mxu0 0
    %175 = vmatpush1.bf16.msra.mxu0 %v150
    %176 = vmatprep.subr.bf16.mxu0 0
    %177 = vmatpush1.bf16.msra.mxu0 %v149
    %178 = vmatprep.subr.bf16.mxu0 0
    %179 = vmatpush1.bf16.msra.mxu0 %v148
    %180 = vmatprep.subr.bf16.mxu0 0
    %181 = vmatpush2.bf16.msra.mxu0 0
    %182 = vmatprep.subr.bf16.mxu0 0
    %183 = vmatpush2.bf16.msra.mxu0 0
    %184 = vmatprep.subr.bf16.mxu0 0
    %185 = vmatpush2.bf16.msra.mxu0 0
    %186 = vmatprep.subr.bf16.mxu0 0
    %187 = vmatpush2.bf16.msra.mxu0 0
    %188 = vmatprep.subr.bf16.mxu0 0
    %189 = vmatpush2.bf16.msra.mxu0 0
    %190 = vmatprep.subr.bf16.mxu0 0
    %191 = vmatpush2.bf16.msra.mxu0 0
    %192 = vmatprep.subr.bf16.mxu0 0
    %193 = vmatpush2.bf16.msra.mxu0 0
    %194 = vmatprep.subr.bf16.mxu0 0
    %195 = vmatpush2.bf16.msra.mxu0 0
    %196 = vmatprep.mubr.bf16.mxu0 0
    %197 = vmatmul.mubr.bf16.gmra.mxu0 %v114
    %v198 = vpop.f32.mrf.mxu0
    %v199 = vadd.f32 %v108, %v198
    %v200 = vpop.f32.mrf.mxu0
    %v201 = vpop.f32.mrf.mxu0
    %v202 = vadd.f32 %v108, %v201
    %v203 = vpop.f32.mrf.mxu0
    %204 = vdwg.mxu0
    %v205 = vmax.f32 %v199, 0.0
    %v206 = vmax.f32 %v202, 0.0
    %v207 = vpack.c.bf16 %v206, %v205
    %v208 = vld [vmem:[#allocation7] sm:$0xf]
    %v209 = vld [vmem:[#allocation7 + $0x4] sm:$0xf]
    %v210 = vld [vmem:[#allocation7 + $0x8] sm:$0xf]
    %v211 = vld [vmem:[#allocation7 + $0xc] sm:$0xf]
    %v212 = vld [vmem:[#allocation7 + $0x10] sm:$0xf]
    %v213 = vld [vmem:[#allocation7 + $0x14] sm:$0xf]
    %v214 = vld [vmem:[#allocation7 + $0x18] sm:$0xf]
    %v215 = vld [vmem:[#allocation7 + $0x1c] sm:$0xf]
    %v216 = vld [vmem:[#allocation7 + $0x20] sm:$0xf]
    %v217 = vld [vmem:[#allocation7 + $0x24] sm:$0xf]
    %v218 = vld [vmem:[#allocation7 + $0x28] sm:$0xf]
    %v219 = vld [vmem:[#allocation7 + $0x2c] sm:$0xf]
    %v220 = vld [vmem:[#allocation7 + $0x30] sm:$0xf]
    %v221 = vld [vmem:[#allocation7 + $0x34] sm:$0xf]
    %v222 = vld [vmem:[#allocation7 + $0x38] sm:$0xf]
    %v223 = vld [vmem:[#allocation7 + $0x3c] sm:$0xf]
    %v224 = vld [vmem:[%s4] sm:$0x1]
    %v226 = vlaneseq
    %v227 = vshrl.u32 %v226, 7
    %v228 = vsub.s32 0, %v227
    %v229 = vrot.slane %v224, %v228
    %v247 = vunpack.c.l.b16 %v208
    %v248 = vunpack.c.l.b16 %v209
    %v249 = vunpack.c.l.b16 %v210
    %v250 = vunpack.c.l.b16 %v211
    %v251 = vunpack.c.l.b16 %v212
    %v252 = vunpack.c.l.b16 %v213
    %v253 = vunpack.c.l.b16 %v214
    %v254 = vunpack.c.l.b16 %v215
    %v255 = vunpack.c.l.b16 %v216
    %v256 = vunpack.c.l.b16 %v217
    %v257 = vunpack.c.l.b16 %v218
    %v258 = vunpack.c.l.b16 %v219
    %v259 = vunpack.c.l.b16 %v220
    %v260 = vunpack.c.l.b16 %v221
    %v261 = vunpack.c.l.b16 %v222
    %v262 = vunpack.c.l.b16 %v223
    %v263 = vpack.c.b16 %v248, %v247
    %v264 = vpack.c.b16 %v250, %v249
    %v265 = vpack.c.b16 %v252, %v251
    %v266 = vpack.c.b16 %v254, %v253
    %v267 = vpack.c.b16 %v256, %v255
    %v268 = vpack.c.b16 %v258, %v257
    %v269 = vpack.c.b16 %v260, %v259
    %v270 = vpack.c.b16 %v262, %v261
    %279 = vmatprep.subr.bf16.mxu0 0
    %280 = vmatpush1.bf16.msra.mxu0 %v270
    %281 = vmatprep.subr.bf16.mxu0 0
    %282 = vmatpush1.bf16.msra.mxu0 %v269
    %283 = vmatprep.subr.bf16.mxu0 0
    %284 = vmatpush1.bf16.msra.mxu0 %v268
    %285 = vmatprep.subr.bf16.mxu0 0
    %286 = vmatpush1.bf16.msra.mxu0 %v267
    %287 = vmatprep.subr.bf16.mxu0 0
    %288 = vmatpush1.bf16.msra.mxu0 %v266
    %289 = vmatprep.subr.bf16.mxu0 0
    %290 = vmatpush1.bf16.msra.mxu0 %v265
    %291 = vmatprep.subr.bf16.mxu0 0
    %292 = vmatpush1.bf16.msra.mxu0 %v264
    %293 = vmatprep.subr.bf16.mxu0 0
    %294 = vmatpush1.bf16.msra.mxu0 %v263
    %295 = vmatprep.subr.bf16.mxu0 0
    %296 = vmatpush2.bf16.msra.mxu0 0
    %297 = vmatprep.subr.bf16.mxu0 0
    %298 = vmatpush2.bf16.msra.mxu0 0
    %299 = vmatprep.subr.bf16.mxu0 0
    %300 = vmatpush2.bf16.msra.mxu0 0
    %301 = vmatprep.subr.bf16.mxu0 0
    %302 = vmatpush2.bf16.msra.mxu0 0
    %303 = vmatprep.subr.bf16.mxu0 0
    %304 = vmatpush2.bf16.msra.mxu0 0
    %305 = vmatprep.subr.bf16.mxu0 0
    %306 = vmatpush2.bf16.msra.mxu0 0
    %307 = vmatprep.subr.bf16.mxu0 0
    %308 = vmatpush2.bf16.msra.mxu0 0
    %309 = vmatprep.subr.bf16.mxu0 0
    %310 = vmatpush2.bf16.msra.mxu0 0
    %311 = vmatprep.mubr.bf16.mxu0 0
    %312 = vmatmul.mubr.bf16.gmra.mxu0 %v207
    %v313 = vpop.f32.mrf.mxu0
    %v314 = vadd.f32 %v229, %v313
    %v315 = vpop.f32.mrf.mxu0
    %v316 = vpop.f32.mrf.mxu0
    %v317 = vadd.f32 %v229, %v316
    %v318 = vpop.f32.mrf.mxu0
    %319 = vdwg.mxu0
    %v320 = vmax.f32 %v314, 0.0
    %v321 = vmax.f32 %v317, 0.0
    %v322 = vpack.c.bf16 %v321, %v320
    %v323 = vld [vmem:[#allocation8] sm:$0xf]
    %v324 = vld [vmem:[#allocation8 + $0x4] sm:$0xf]
    %v325 = vld [vmem:[#allocation8 + $0x8] sm:$0xf]
    %v326 = vld [vmem:[#allocation8 + $0xc] sm:$0xf]
    %v327 = vld [vmem:[#allocation8 + $0x10] sm:$0xf]
    %v328 = vld [vmem:[#allocation8 + $0x14] sm:$0xf]
    %v329 = vld [vmem:[#allocation8 + $0x18] sm:$0xf]
    %v330 = vld [vmem:[#allocation8 + $0x1c] sm:$0xf]
    %v331 = vld [vmem:[#allocation8 + $0x20] sm:$0xf]
    %v332 = vld [vmem:[#allocation8 + $0x24] sm:$0xf]
    %v333 = vld [vmem:[#allocation8 + $0x28] sm:$0xf]
    %v334 = vld [vmem:[#allocation8 + $0x2c] sm:$0xf]
    %v335 = vld [vmem:[#allocation8 + $0x30] sm:$0xf]
    %v336 = vld [vmem:[#allocation8 + $0x34] sm:$0xf]
    %v337 = vld [vmem:[#allocation8 + $0x38] sm:$0xf]
    %v338 = vld [vmem:[#allocation8 + $0x3c] sm:$0xf]
    %v339 = vld [vmem:[%s6] sm:$0x1]
    %v341 = vlaneseq
    %v342 = vshrl.u32 %v341, 7
    %v343 = vsub.s32 0, %v342
    %v344 = vrot.slane %v339, %v343
    %v362 = vunpack.c.l.b16 %v323
    %v363 = vunpack.c.l.b16 %v324
    %v364 = vunpack.c.l.b16 %v325
    %v365 = vunpack.c.l.b16 %v326
    %v366 = vunpack.c.l.b16 %v327
    %v367 = vunpack.c.l.b16 %v328
    %v368 = vunpack.c.l.b16 %v329
    %v369 = vunpack.c.l.b16 %v330
    %v370 = vunpack.c.l.b16 %v331
    %v371 = vunpack.c.l.b16 %v332
    %v372 = vunpack.c.l.b16 %v333
    %v373 = vunpack.c.l.b16 %v334
    %v374 = vunpack.c.l.b16 %v335
    %v375 = vunpack.c.l.b16 %v336
    %v376 = vunpack.c.l.b16 %v337
    %v377 = vunpack.c.l.b16 %v338
    %v378 = vpack.c.b16 %v363, %v362
    %v379 = vpack.c.b16 %v365, %v364
    %v380 = vpack.c.b16 %v367, %v366
    %v381 = vpack.c.b16 %v369, %v368
    %v382 = vpack.c.b16 %v371, %v370
    %v383 = vpack.c.b16 %v373, %v372
    %v384 = vpack.c.b16 %v375, %v374
    %v385 = vpack.c.b16 %v377, %v376
    %394 = vmatprep.subr.bf16.mxu0 0
    %395 = vmatpush1.bf16.msra.mxu0 %v385
    %396 = vmatprep.subr.bf16.mxu0 0
    %397 = vmatpush1.bf16.msra.mxu0 %v384
    %398 = vmatprep.subr.bf16.mxu0 0
    %399 = vmatpush1.bf16.msra.mxu0 %v383
    %400 = vmatprep.subr.bf16.mxu0 0
    %401 = vmatpush1.bf16.msra.mxu0 %v382
    %402 = vmatprep.subr.bf16.mxu0 0
    %403 = vmatpush1.bf16.msra.mxu0 %v381
    %404 = vmatprep.subr.bf16.mxu0 0
    %405 = vmatpush1.bf16.msra.mxu0 %v380
    %406 = vmatprep.subr.bf16.mxu0 0
    %407 = vmatpush1.bf16.msra.mxu0 %v379
    %408 = vmatprep.subr.bf16.mxu0 0
    %409 = vmatpush1.bf16.msra.mxu0 %v378
    %410 = vmatprep.subr.bf16.mxu0 0
    %411 = vmatpush2.bf16.msra.mxu0 0
    %412 = vmatprep.subr.bf16.mxu0 0
    %413 = vmatpush2.bf16.msra.mxu0 0
    %414 = vmatprep.subr.bf16.mxu0 0
    %415 = vmatpush2.bf16.msra.mxu0 0
    %416 = vmatprep.subr.bf16.mxu0 0
    %417 = vmatpush2.bf16.msra.mxu0 0
    %418 = vmatprep.subr.bf16.mxu0 0
    %419 = vmatpush2.bf16.msra.mxu0 0
    %420 = vmatprep.subr.bf16.mxu0 0
    %421 = vmatpush2.bf16.msra.mxu0 0
    %422 = vmatprep.subr.bf16.mxu0 0
    %423 = vmatpush2.bf16.msra.mxu0 0
    %424 = vmatprep.subr.bf16.mxu0 0
    %425 = vmatpush2.bf16.msra.mxu0 0
    %426 = vmatprep.mubr.bf16.mxu0 0
    %427 = vmatmul.mubr.bf16.gmra.mxu0 %v322
    %v428 = vpop.f32.mrf.mxu0
    %v429 = vadd.f32 %v344, %v428
    %v430 = vpop.f32.mrf.mxu0
    %v431 = vpop.f32.mrf.mxu0
    %v432 = vadd.f32 %v344, %v431
    %v433 = vpop.f32.mrf.mxu0
    %434 = vdwg.mxu0
    %v435 = vlaneseq
    %v436 = vand.u32 %v435, 127
    %vm437 = vcmp.eq.s32.totalorder %v436, 8
    %v438 = vsel %vm437, %v429, 0.0
    %v439 = vsel %vm437, %v432, 0.0
    %440 = vadd.xlane.f32.xlu0 %v438
    %v441 = vpop.xlane.xlu0 %440
    %442 = vadd.xlane.f32.xlu0 %v439
    %v443 = vpop.xlane.xlu0 %442
    %vm444 = vcmask 7168
    %445 = vst.msk [vmem:[%s8] sm:$0xff] %vm444, %v441
    %446 = vst.msk [vmem:[%s8 + $0x8] sm:$0xff] %vm444, %v443
    %vm447 = vcmp.lt.s32.totalorder %v436, 8
    %v448 = vsel %vm447, %v429, -inf
    %v449 = vsel %vm447, %v432, -inf
    %450 = vmax.xlane.f32.xlu0 %v448
    %v451 = vpop.xlane.xlu0 %450
    %452 = vmax.xlane.f32.xlu0 %v449
    %v453 = vpop.xlane.xlu0 %452
    %v454 = vsub.f32 %v448, %v451
    %v455 = vsub.f32 %v449, %v453
    %v456 = vmul.f32 %v454, 1.442695
    %v457 = vpow.pop %v456
    %v458 = vmul.f32 %v455, 1.442695
    %v459 = vpow.pop %v458
    %460 = vadd.xlane.f32.xlu0 %v457
    %v461 = vpop.xlane.xlu0 %460
    %462 = vadd.xlane.f32.xlu0 %v459
    %v463 = vpop.xlane.xlu0 %462
    %v464 = vrcp.pop %v461
    %v465 = vrcp.pop %v463
    %v466 = vmul.f32 %v457, %v464
    %v467 = vmul.f32 %v459, %v465
    %v468 = vpack.c.bf16 %v467, %v466
    %v470 = vunpack.c.l.b16 %v468
    %v471 = vunpack.c.h.b16 %v468
    %v472 = vpack.c.b16 %v470, %v470
    %v473 = vpack.c.b16 %v471, %v471
    %476 = vst [vmem:[#allocation10] sm:$0xf] %v472
    %477 = vst [vmem:[#allocation10 + $0x4] sm:$0xf] %v473
    // Predicated region
    $region46: #{tpu_custom_call.1} parent=1 // pred_check
      _
    $region47: #{tpu_custom_call.1} parent=1 // pred_check_branch
      %479 = sbr.rel (0) target = $region49
    $region48: #{tpu_custom_call.1} parent=1 // pred_region
      %s481 = ssub.s32 128, 128
      %482 = vsyncadd [#allocation4], %s481
      %s483 = sshll.u32 [#allocation10], 4
      %s484 = int_to_ptr.vmem [resolvable:$true] %s483
      %489 = dma.vmem_to_hbm [thread:$0]  %s484, 128, %s7, [#allocation4], 64, 64, 4
    $region49: #{tpu_custom_call.1} parent=1 // pred_fallthru
      _
    // Predicated region
    $region50: #{tpu_custom_call.1} parent=1 // pred_check
      _
    $region51: #{tpu_custom_call.1} parent=1 // pred_check_branch
      %491 = sbr.rel (0) target = $region53
    $region52: #{tpu_custom_call.1} parent=1 // pred_region
      _
    $region53: #{tpu_custom_call.1} parent=1 // pred_fallthru
      _
    // Predicated region
    $region54: #{tpu_custom_call.1} parent=1 // pred_check
      _
    $region55: #{tpu_custom_call.1} parent=1 // pred_check_branch
      %493 = sbr.rel (0) target = $region57
    $region56: #{tpu_custom_call.1} parent=1 // pred_region
      %494 = dma.done [#allocation4], 128
    $region57: #{tpu_custom_call.1} parent=1 // pred_fallthru
      _
    // Predicated region
    $region58: #{tpu_custom_call.1} parent=1 // pred_check
      _
    $region59: #{tpu_custom_call.1} parent=1 // pred_check_branch
      %496 = sbr.rel (0) target = $region61
    $region60: #{tpu_custom_call.1} parent=1 // pred_region
      _
    $region61: #{tpu_custom_call.1} parent=1 // pred_fallthru
      _
    %497 = vsyncpa [#allocation3], 1
    %498 = vsyncpa [#allocation6], 1
    %499 = vsyncpa [#allocation9], 1
    %500 = vsyncpa [#allocation4], 1

// kernel: tpu_custom_call.1
$region0: #{tpu_custom_call.1}
  #allocation0 [shape = 'u32[]', space=smem, size = 0x4, offset = 0x4, fixed_abs, tag = 'smem constant byte address 0x4 - core index']
  #allocation1 [shape = 'u32[144,128]{1,0:T(1,128)}', space=vmem, size = 0x12000, scoped, tag = 'internal scratch']
  %s0 = inlined_call_operand.hbm [shape: bf16[16,128], index: 0, kind: input, shape index: {}]
  %s1 = inlined_call_operand.hbm [shape: bf16[128,128], index: 1, kind: input, shape index: {}]
  %s2 = inlined_call_operand.vmem [shape: f32[1,128], index: 2, kind: input, shape index: {}]
  %s3 = inlined_call_operand.hbm [shape: bf16[128,128], index: 3, kind: input, shape index: {}]
  %s4 = inlined_call_operand.vmem [shape: f32[1,128], index: 4, kind: input, shape index: {}]
  %s5 = inlined_call_operand.hbm [shape: bf16[128,128], index: 5, kind: input, shape index: {}]
  %s6 = inlined_call_operand.vmem [shape: f32[1,128], index: 6, kind: input, shape index: {}]
  %s7 = inlined_call_operand.hbm [shape: bf16[16,128], index: 7, kind: output, shape index: {0}]
  %s8 = inlined_call_operand.vmem [shape: f32[16,1], index: 8, kind: output, shape index: {1}]
  %9 = xla_tuple %s7, %s8
  %s10 = sld [smem:[#allocation0]]
  $region62: #{tpu_custom_call.1} parent=0
    _
  %s12 = ssub.s32 1, %s10
  %s13 = scalar_select 0, %s12, %s10
  $region1: #{tpu_custom_call.1} parent=0
    #allocation2 [shape = 'u8[4096]{0}', space=vmem, size = 0x1000, scoped, tag = 'input window, operand 0, single buffered']
    #allocation3 [shape = 's32[1]{0}', space=sflag, size = 0x4, scoped, tag = 'scoped memory for tpu_custom_call.1']
    #allocation4 [shape = 's32[1]{0}', space=sflag, size = 0x4, scoped, tag = 'scoped memory for tpu_custom_call.1']
    #allocation5 [shape = 'u8[32768]{0}', space=vmem, size = 0x8000, scoped, tag = 'input window, operand 1, single buffered']
    #allocation6 [shape = 's32[1]{0}', space=sflag, size = 0x4, scoped, tag = 'scoped memory for tpu_custom_call.1']
    #allocation7 [shape = 'u8[32768]{0}', space=vmem, size = 0x8000, scoped, tag = 'input window, operand 3, single buffered']
    #allocation8 [shape = 'u8[32768]{0}', space=vmem, size = 0x8000, scoped, tag = 'input window, operand 5, single buffered']
    #allocation9 [shape = 's32[1]{0}', space=sflag, size = 0x4, scoped, tag = 'scoped memory for tpu_custom_call.1']
    #allocation10 [shape = 'u8[4096]{0}', space=vmem, size = 0x1000, scoped, tag = 'output window, operand 0, single buffered']
    %14 = vsyncpa [#allocation3], 0
    %15 = vsyncpa [#allocation6], 0
    %16 = vsyncpa [#allocation9], 0
    %17 = vsyncpa [#allocation4], 0
    // Predicated region
    $region2: #{tpu_custom_call.1} parent=1 // pred_check
      _
    $region3: #{tpu_custom_call.1} parent=1 // pred_check_branch
      %19 = sbr.rel (0) target = $region5
    $region4: #{tpu_custom_call.1} parent=1 // pred_region
      %s21 = ssub.s32 128, 128
      %22 = vsyncadd [#allocation3], %s21
      %s23 = sshll.u32 [#allocation2], 4
      %s24 = int_to_ptr.vmem [resolvable:$true] %s23
      %29 = dma.hbm_to_vmem [thread:$0]  %s0, 128, %s24, [#allocation3], 64, 64, 4
    $region5: #{tpu_custom_call.1} parent=1 // pred_fallthru
      _
    // Predicated region
    $region6: #{tpu_custom_call.1} parent=1 // pred_check
      _
    $region7: #{tpu_custom_call.1} parent=1 // pred_check_branch
      %31 = sbr.rel (0) target = $region9
    $region8: #{tpu_custom_call.1} parent=1 // pred_region
      %s33 = ssub.s32 1024, 1024
      %34 = vsyncadd [#allocation6], %s33
      %s35 = sshll.u32 [#allocation5], 4
      %s36 = int_to_ptr.vmem [resolvable:$true] %s35
      %41 = dma.hbm_to_vmem [thread:$0]  %s1, 1024, %s36, [#allocation6], 64, 64, 4
    $region9: #{tpu_custom_call.1} parent=1 // pred_fallthru
      _
    // Predicated region
    $region10: #{tpu_custom_call.1} parent=1 // pred_check
      _
    $region11: #{tpu_custom_call.1} parent=1 // pred_check_branch
      %43 = sbr.rel (0) target = $region13
    $region12: #{tpu_custom_call.1} parent=1 // pred_region
      _
    $region13: #{tpu_custom_call.1} parent=1 // pred_fallthru
      _
    // Predicated region
    $region14: #{tpu_custom_call.1} parent=1 // pred_check
      _
    $region15: #{tpu_custom_call.1} parent=1 // pred_check_branch
      %45 = sbr.rel (0) target = $region17
    $region16: #{tpu_custom_call.1} parent=1 // pred_region
      %s47 = ssub.s32 1024, 1024
      %48 = vsyncadd [#allocation6], %s47
      %s49 = sshll.u32 [#allocation7], 4
      %s50 = int_to_ptr.vmem [resolvable:$true] %s49
      %55 = dma.hbm_to_vmem [thread:$0]  %s3, 1024, %s50, [#allocation6], 64, 64, 4
    $region17: #{tpu_custom_call.1} parent=1 // pred_fallthru
      _
    // Predicated region
    $region18: #{tpu_custom_call.1} parent=1 // pred_check
      _
    $region19: #{tpu_custom_call.1} parent=1 // pred_check_branch
      %57 = sbr.rel (0) target = $region21
    $region20: #{tpu_custom_call.1} parent=1 // pred_region
      _
    $region21: #{tpu_custom_call.1} parent=1 // pred_fallthru
      _
    // Predicated region
    $region22: #{tpu_custom_call.1} parent=1 // pred_check
      _
    $region23: #{tpu_custom_call.1} parent=1 // pred_check_branch
      %59 = sbr.rel (0) target = $region25
    $region24: #{tpu_custom_call.1} parent=1 // pred_region
      %s61 = ssub.s32 1024, 1024
      %62 = vsyncadd [#allocation9], %s61
      %s63 = sshll.u32 [#allocation8], 4
      %s64 = int_to_ptr.vmem [resolvable:$true] %s63
      %69 = dma.hbm_to_vmem [thread:$0]  %s5, 1024, %s64, [#allocation9], 64, 64, 4
    $region25: #{tpu_custom_call.1} parent=1 // pred_fallthru
      _
    // Predicated region
    $region26: #{tpu_custom_call.1} parent=1 // pred_check
      _
    $region27: #{tpu_custom_call.1} parent=1 // pred_check_branch
      %71 = sbr.rel (0) target = $region29
    $region28: #{tpu_custom_call.1} parent=1 // pred_region
      _
    $region29: #{tpu_custom_call.1} parent=1 // pred_fallthru
      _
    // Predicated region
    $region30: #{tpu_custom_call.1} parent=1 // pred_check
      _
    $region31: #{tpu_custom_call.1} parent=1 // pred_check_branch
      %73 = sbr.rel (0) target = $region33
    $region32: #{tpu_custom_call.1} parent=1 // pred_region
      %74 = dma.done [#allocation3], 128
    $region33: #{tpu_custom_call.1} parent=1 // pred_fallthru
      _
    // Predicated region
    $region34: #{tpu_custom_call.1} parent=1 // pred_check
      _
    $region35: #{tpu_custom_call.1} parent=1 // pred_check_branch
      %76 = sbr.rel (0) target = $region37
    $region36: #{tpu_custom_call.1} parent=1 // pred_region
      %77 = dma.done [#allocation6], 1024
    $region37: #{tpu_custom_call.1} parent=1 // pred_fallthru
      _
    // Predicated region
    $region38: #{tpu_custom_call.1} parent=1 // pred_check
      _
    $region39: #{tpu_custom_call.1} parent=1 // pred_check_branch
      %79 = sbr.rel (0) target = $region41
    $region40: #{tpu_custom_call.1} parent=1 // pred_region
      %80 = dma.done [#allocation6], 1024
    $region41: #{tpu_custom_call.1} parent=1 // pred_fallthru
      _
    // Predicated region
    $region42: #{tpu_custom_call.1} parent=1 // pred_check
      _
    $region43: #{tpu_custom_call.1} parent=1 // pred_check_branch
      %82 = sbr.rel (0) target = $region45
    $region44: #{tpu_custom_call.1} parent=1 // pred_region
      %83 = dma.done [#allocation9], 1024
    $region45: #{tpu_custom_call.1} parent=1 // pred_fallthru
      _
    %v85 = vld [vmem:[#allocation2] sm:$0xf]
    %v86 = vld [vmem:[#allocation2 + $0x4] sm:$0xf]
    %v87 = vld [vmem:[#allocation5] sm:$0xf]
    %v88 = vld [vmem:[#allocation5 + $0x4] sm:$0xf]
    %v89 = vld [vmem:[#allocation5 + $0x8] sm:$0xf]
    %v90 = vld [vmem:[#allocation5 + $0xc] sm:$0xf]
    %v91 = vld [vmem:[#allocation5 + $0x10] sm:$0xf]
    %v92 = vld [vmem:[#allocation5 + $0x14] sm:$0xf]
    %v93 = vld [vmem:[#allocation5 + $0x18] sm:$0xf]
    %v94 = vld [vmem:[#allocation5 + $0x1c] sm:$0xf]
    %v95 = vld [vmem:[#allocation5 + $0x20] sm:$0xf]
    %v96 = vld [vmem:[#allocation5 + $0x24] sm:$0xf]
    %v97 = vld [vmem:[#allocation5 + $0x28] sm:$0xf]
    %v98 = vld [vmem:[#allocation5 + $0x2c] sm:$0xf]
    %v99 = vld [vmem:[#allocation5 + $0x30] sm:$0xf]
    %v100 = vld [vmem:[#allocation5 + $0x34] sm:$0xf]
    %v101 = vld [vmem:[#allocation5 + $0x38] sm:$0xf]
    %v102 = vld [vmem:[#allocation5 + $0x3c] sm:$0xf]
    %v103 = vld [vmem:[%s2] sm:$0x1]
    %v105 = vlaneseq
    %v106 = vshrl.u32 %v105, 7
    %v107 = vsub.s32 0, %v106
    %v108 = vrot.slane %v103, %v107
    %v112 = vunpack.c.l.b16 %v85
    %v113 = vunpack.c.l.b16 %v86
    %v114 = vpack.c.b16 %v113, %v112
    %v132 = vunpack.c.l.b16 %v87
    %v133 = vunpack.c.l.b16 %v88
    %v134 = vunpack.c.l.b16 %v89
    %v135 = vunpack.c.l.b16 %v90
    %v136 = vunpack.c.l.b16 %v91
    %v137 = vunpack.c.l.b16 %v92
    %v138 = vunpack.c.l.b16 %v93
    %v139 = vunpack.c.l.b16 %v94
    %v140 = vunpack.c.l.b16 %v95
    %v141 = vunpack.c.l.b16 %v96
    %v142 = vunpack.c.l.b16 %v97
    %v143 = vunpack.c.l.b16 %v98
    %v144 = vunpack.c.l.b16 %v99
    %v145 = vunpack.c.l.b16 %v100
    %v146 = vunpack.c.l.b16 %v101
    %v147 = vunpack.c.l.b16 %v102
    %v148 = vpack.c.b16 %v133, %v132
    %v149 = vpack.c.b16 %v135, %v134
    %v150 = vpack.c.b16 %v137, %v136
    %v151 = vpack.c.b16 %v139, %v138
    %v152 = vpack.c.b16 %v141, %v140
    %v153 = vpack.c.b16 %v143, %v142
    %v154 = vpack.c.b16 %v145, %v144
    %v155 = vpack.c.b16 %v147, %v146
    %164 = vmatprep.subr.bf16.mxu0 0
    %165 = vmatpush1.bf16.msra.mxu0 %v155
    %166 = vmatprep.subr.bf16.mxu0 0
    %167 = vmatpush1.bf16.msra.mxu0 %v154
    %168 = vmatprep.subr.bf16.mxu0 0
    %169 = vmatpush1.bf16.msra.mxu0 %v153
    %170 = vmatprep.subr.bf16.mxu0 0
    %171 = vmatpush1.bf16.msra.mxu0 %v152
    %172 = vmatprep.subr.bf16.mxu0 0
    %173 = vmatpush1.bf16.msra.mxu0 %v151
    %174 = vmatprep.subr.bf16.mxu0 0
    %175 = vmatpush1.bf16.msra.mxu0 %v150
    %176 = vmatprep.subr.bf16.mxu0 0
    %177 = vmatpush1.bf16.msra.mxu0 %v149
    %178 = vmatprep.subr.bf16.mxu0 0
    %179 = vmatpush1.bf16.msra.mxu0 %v148
    %180 = vmatprep.subr.bf16.mxu0 0
    %181 = vmatpush2.bf16.msra.mxu0 0
    %182 = vmatprep.subr.bf16.mxu0 0
    %183 = vmatpush2.bf16.msra.mxu0 0
    %184 = vmatprep.subr.bf16.mxu0 0
    %185 = vmatpush2.bf16.msra.mxu0 0
    %186 = vmatprep.subr.bf16.mxu0 0
    %187 = vmatpush2.bf16.msra.mxu0 0
    %188 = vmatprep.subr.bf16.mxu0 0
    %189 = vmatpush2.bf16.msra.mxu0 0
    %190 = vmatprep.subr.bf16.mxu0 0
    %191 = vmatpush2.bf16.msra.mxu0 0
    %192 = vmatprep.subr.bf16.mxu0 0
    %193 = vmatpush2.bf16.msra.mxu0 0
    %194 = vmatprep.subr.bf16.mxu0 0
    %195 = vmatpush2.bf16.msra.mxu0 0
    %196 = vmatprep.mubr.bf16.mxu0 0
    %197 = vmatmul.mubr.bf16.gmra.mxu0 %v114
    %v198 = vpop.f32.mrf.mxu0
    %v199 = vadd.f32 %v108, %v198
    %v200 = vpop.f32.mrf.mxu0
    %v201 = vpop.f32.mrf.mxu0
    %v202 = vadd.f32 %v108, %v201
    %v203 = vpop.f32.mrf.mxu0
    %204 = vdwg.mxu0
    %v205 = vmax.f32 %v199, 0.0
    %v206 = vmax.f32 %v202, 0.0
    %v207 = vpack.c.bf16 %v206, %v205
    %v208 = vld [vmem:[#allocation7] sm:$0xf]
    %v209 = vld [vmem:[#allocation7 + $0x4] sm:$0xf]
    %v210 = vld [vmem:[#allocation7 + $0x8] sm:$0xf]
    %v211 = vld [vmem:[#allocation7 + $0xc] sm:$0xf]
    %v212 = vld [vmem:[#allocation7 + $0x10] sm:$0xf]
    %v213 = vld [vmem:[#allocation7 + $0x14] sm:$0xf]
    %v214 = vld [vmem:[#allocation7 + $0x18] sm:$0xf]
    %v215 = vld [vmem:[#allocation7 + $0x1c] sm:$0xf]
    %v216 = vld [vmem:[#allocation7 + $0x20] sm:$0xf]
    %v217 = vld [vmem:[#allocation7 + $0x24] sm:$0xf]
    %v218 = vld [vmem:[#allocation7 + $0x28] sm:$0xf]
    %v219 = vld [vmem:[#allocation7 + $0x2c] sm:$0xf]
    %v220 = vld [vmem:[#allocation7 + $0x30] sm:$0xf]
    %v221 = vld [vmem:[#allocation7 + $0x34] sm:$0xf]
    %v222 = vld [vmem:[#allocation7 + $0x38] sm:$0xf]
    %v223 = vld [vmem:[#allocation7 + $0x3c] sm:$0xf]
    %v224 = vld [vmem:[%s4] sm:$0x1]
    %v226 = vlaneseq
    %v227 = vshrl.u32 %v226, 7
    %v228 = vsub.s32 0, %v227
    %v229 = vrot.slane %v224, %v228
    %v247 = vunpack.c.l.b16 %v208
    %v248 = vunpack.c.l.b16 %v209
    %v249 = vunpack.c.l.b16 %v210
    %v250 = vunpack.c.l.b16 %v211
    %v251 = vunpack.c.l.b16 %v212
    %v252 = vunpack.c.l.b16 %v213
    %v253 = vunpack.c.l.b16 %v214
    %v254 = vunpack.c.l.b16 %v215
    %v255 = vunpack.c.l.b16 %v216
    %v256 = vunpack.c.l.b16 %v217
    %v257 = vunpack.c.l.b16 %v218
    %v258 = vunpack.c.l.b16 %v219
    %v259 = vunpack.c.l.b16 %v220
    %v260 = vunpack.c.l.b16 %v221
    %v261 = vunpack.c.l.b16 %v222
    %v262 = vunpack.c.l.b16 %v223
    %v263 = vpack.c.b16 %v248, %v247
    %v264 = vpack.c.b16 %v250, %v249
    %v265 = vpack.c.b16 %v252, %v251
    %v266 = vpack.c.b16 %v254, %v253
    %v267 = vpack.c.b16 %v256, %v255
    %v268 = vpack.c.b16 %v258, %v257
    %v269 = vpack.c.b16 %v260, %v259
    %v270 = vpack.c.b16 %v262, %v261
    %279 = vmatprep.subr.bf16.mxu0 0
    %280 = vmatpush1.bf16.msra.mxu0 %v270
    %281 = vmatprep.subr.bf16.mxu0 0
    %282 = vmatpush1.bf16.msra.mxu0 %v269
    %283 = vmatprep.subr.bf16.mxu0 0
    %284 = vmatpush1.bf16.msra.mxu0 %v268
    %285 = vmatprep.subr.bf16.mxu0 0
    %286 = vmatpush1.bf16.msra.mxu0 %v267
    %287 = vmatprep.subr.bf16.mxu0 0
    %288 = vmatpush1.bf16.msra.mxu0 %v266
    %289 = vmatprep.subr.bf16.mxu0 0
    %290 = vmatpush1.bf16.msra.mxu0 %v265
    %291 = vmatprep.subr.bf16.mxu0 0
    %292 = vmatpush1.bf16.msra.mxu0 %v264
    %293 = vmatprep.subr.bf16.mxu0 0
    %294 = vmatpush1.bf16.msra.mxu0 %v263
    %295 = vmatprep.subr.bf16.mxu0 0
    %296 = vmatpush2.bf16.msra.mxu0 0
    %297 = vmatprep.subr.bf16.mxu0 0
    %298 = vmatpush2.bf16.msra.mxu0 0
    %299 = vmatprep.subr.bf16.mxu0 0
    %300 = vmatpush2.bf16.msra.mxu0 0
    %301 = vmatprep.subr.bf16.mxu0 0
    %302 = vmatpush2.bf16.msra.mxu0 0
    %303 = vmatprep.subr.bf16.mxu0 0
    %304 = vmatpush2.bf16.msra.mxu0 0
    %305 = vmatprep.subr.bf16.mxu0 0
    %306 = vmatpush2.bf16.msra.mxu0 0
    %307 = vmatprep.subr.bf16.mxu0 0
    %308 = vmatpush2.bf16.msra.mxu0 0
    %309 = vmatprep.subr.bf16.mxu0 0
    %310 = vmatpush2.bf16.msra.mxu0 0
    %311 = vmatprep.mubr.bf16.mxu0 0
    %312 = vmatmul.mubr.bf16.gmra.mxu0 %v207
    %v313 = vpop.f32.mrf.mxu0
    %v314 = vadd.f32 %v229, %v313
    %v315 = vpop.f32.mrf.mxu0
    %v316 = vpop.f32.mrf.mxu0
    %v317 = vadd.f32 %v229, %v316
    %v318 = vpop.f32.mrf.mxu0
    %319 = vdwg.mxu0
    %v320 = vmax.f32 %v314, 0.0
    %v321 = vmax.f32 %v317, 0.0
    %v322 = vpack.c.bf16 %v321, %v320
    %v323 = vld [vmem:[#allocation8] sm:$0xf]
    %v324 = vld [vmem:[#allocation8 + $0x4] sm:$0xf]
    %v325 = vld [vmem:[#allocation8 + $0x8] sm:$0xf]
    %v326 = vld [vmem:[#allocation8 + $0xc] sm:$0xf]
    %v327 = vld [vmem:[#allocation8 + $0x10] sm:$0xf]
    %v328 = vld [vmem:[#allocation8 + $0x14] sm:$0xf]
    %v329 = vld [vmem:[#allocation8 + $0x18] sm:$0xf]
    %v330 = vld [vmem:[#allocation8 + $0x1c] sm:$0xf]
    %v331 = vld [vmem:[#allocation8 + $0x20] sm:$0xf]
    %v332 = vld [vmem:[#allocation8 + $0x24] sm:$0xf]
    %v333 = vld [vmem:[#allocation8 + $0x28] sm:$0xf]
    %v334 = vld [vmem:[#allocation8 + $0x2c] sm:$0xf]
    %v335 = vld [vmem:[#allocation8 + $0x30] sm:$0xf]
    %v336 = vld [vmem:[#allocation8 + $0x34] sm:$0xf]
    %v337 = vld [vmem:[#allocation8 + $0x38] sm:$0xf]
    %v338 = vld [vmem:[#allocation8 + $0x3c] sm:$0xf]
    %v339 = vld [vmem:[%s6] sm:$0x1]
    %v341 = vlaneseq
    %v342 = vshrl.u32 %v341, 7
    %v343 = vsub.s32 0, %v342
    %v344 = vrot.slane %v339, %v343
    %v362 = vunpack.c.l.b16 %v323
    %v363 = vunpack.c.l.b16 %v324
    %v364 = vunpack.c.l.b16 %v325
    %v365 = vunpack.c.l.b16 %v326
    %v366 = vunpack.c.l.b16 %v327
    %v367 = vunpack.c.l.b16 %v328
    %v368 = vunpack.c.l.b16 %v329
    %v369 = vunpack.c.l.b16 %v330
    %v370 = vunpack.c.l.b16 %v331
    %v371 = vunpack.c.l.b16 %v332
    %v372 = vunpack.c.l.b16 %v333
    %v373 = vunpack.c.l.b16 %v334
    %v374 = vunpack.c.l.b16 %v335
    %v375 = vunpack.c.l.b16 %v336
    %v376 = vunpack.c.l.b16 %v337
    %v377 = vunpack.c.l.b16 %v338
    %v378 = vpack.c.b16 %v363, %v362
    %v379 = vpack.c.b16 %v365, %v364
    %v380 = vpack.c.b16 %v367, %v366
    %v381 = vpack.c.b16 %v369, %v368
    %v382 = vpack.c.b16 %v371, %v370
    %v383 = vpack.c.b16 %v373, %v372
    %v384 = vpack.c.b16 %v375, %v374
    %v385 = vpack.c.b16 %v377, %v376
    %394 = vmatprep.subr.bf16.mxu0 0
    %395 = vmatpush1.bf16.msra.mxu0 %v385
    %396 = vmatprep.subr.bf16.mxu0 0
    %397 = vmatpush1.bf16.msra.mxu0 %v384
    %398 = vmatprep.subr.bf16.mxu0 0
    %399 = vmatpush1.bf16.msra.mxu0 %v383
    %400 = vmatprep.subr.bf16.mxu0 0
    %401 = vmatpush1.bf16.msra.mxu0 %v382
    %402 = vmatprep.subr.bf16.mxu0 0
    %403 = vmatpush1.bf16.msra.mxu0 %v381
    %404 = vmatprep.subr.bf16.mxu0 0
    %405 = vmatpush1.bf16.msra.mxu0 %v380
    %406 = vmatprep.subr.bf16.mxu0 0
    %407 = vmatpush1.bf16.msra.mxu0 %v379
    %408 = vmatprep.subr.bf16.mxu0 0
    %409 = vmatpush1.bf16.msra.mxu0 %v378
    %410 = vmatprep.subr.bf16.mxu0 0
    %411 = vmatpush2.bf16.msra.mxu0 0
    %412 = vmatprep.subr.bf16.mxu0 0
    %413 = vmatpush2.bf16.msra.mxu0 0
    %414 = vmatprep.subr.bf16.mxu0 0
    %415 = vmatpush2.bf16.msra.mxu0 0
    %416 = vmatprep.subr.bf16.mxu0 0
    %417 = vmatpush2.bf16.msra.mxu0 0
    %418 = vmatprep.subr.bf16.mxu0 0
    %419 = vmatpush2.bf16.msra.mxu0 0
    %420 = vmatprep.subr.bf16.mxu0 0
    %421 = vmatpush2.bf16.msra.mxu0 0
    %422 = vmatprep.subr.bf16.mxu0 0
    %423 = vmatpush2.bf16.msra.mxu0 0
    %424 = vmatprep.subr.bf16.mxu0 0
    %425 = vmatpush2.bf16.msra.mxu0 0
    %426 = vmatprep.mubr.bf16.mxu0 0
    %427 = vmatmul.mubr.bf16.gmra.mxu0 %v322
    %v428 = vpop.f32.mrf.mxu0
    %v429 = vadd.f32 %v344, %v428
    %v430 = vpop.f32.mrf.mxu0
    %v431 = vpop.f32.mrf.mxu0
    %v432 = vadd.f32 %v344, %v431
    %v433 = vpop.f32.mrf.mxu0
    %434 = vdwg.mxu0
    %v435 = vlaneseq
    %v436 = vand.u32 %v435, 127
    %vm437 = vcmp.eq.s32.totalorder %v436, 8
    %v438 = vsel %vm437, %v429, 0.0
    %v439 = vsel %vm437, %v432, 0.0
    %440 = vadd.xlane.f32.xlu0 %v438
    %v441 = vpop.xlane.xlu0 %440
    %442 = vadd.xlane.f32.xlu0 %v439
    %v443 = vpop.xlane.xlu0 %442
    %vm444 = vcmask 7168
    %445 = vst.msk [vmem:[%s8] sm:$0xff] %vm444, %v441
    %446 = vst.msk [vmem:[%s8 + $0x8] sm:$0xff] %vm444, %v443
    %vm447 = vcmp.lt.s32.totalorder %v436, 8
    %v448 = vsel %vm447, %v429, -inf
    %v449 = vsel %vm447, %v432, -inf
    %450 = vmax.xlane.f32.xlu0 %v448
    %v451 = vpop.xlane.xlu0 %450
    %452 = vmax.xlane.f32.xlu0 %v449
    %v453 = vpop.xlane.xlu0 %452
    %v454 = vsub.f32 %v448, %v451
    %v455 = vsub.f32 %v449, %v453
    %v456 = vmul.f32 %v454, 1.442695
    %v457 = vpow.pop %v456
    %v458 = vmul.f32 %v455, 1.442695
    %v459 = vpow.pop %v458
    %460 = vadd.xlane.f32.xlu0 %v457
    %v461 = vpop.xlane.xlu0 %460
    %462 = vadd.xlane.f32.xlu0 %v459
    %v463 = vpop.xlane.xlu0 %462
    %v464 = vrcp.pop %v461
    %v465 = vrcp.pop %v463
    %v466 = vmul.f32 %v457, %v464
    %v467 = vmul.f32 %v459, %v465
    %v468 = vpack.c.bf16 %v467, %v466
    %v470 = vunpack.c.l.b16 %v468
    %v471 = vunpack.c.h.b16 %v468
    %v472 = vpack.c.b16 %v470, %v470
    %v473 = vpack.c.b16 %v471, %v471
    %476 = vst [vmem:[#allocation10] sm:$0xf] %v472
    %477 = vst [vmem:[#allocation10 + $0x4] sm:$0xf] %v473
    // Predicated region
    $region46: #{tpu_custom_call.1} parent=1 // pred_check
      _
    $region47: #{tpu_custom_call.1} parent=1 // pred_check_branch
      %479 = sbr.rel (0) target = $region49
    $region48: #{tpu_custom_call.1} parent=1 // pred_region
      %s481 = ssub.s32 128, 128
      %482 = vsyncadd [#allocation4], %s481
      %s483 = sshll.u32 [#allocation10], 4
      %s484 = int_to_ptr.vmem [resolvable:$true] %s483
      %489 = dma.vmem_to_hbm [thread:$0]  %s484, 128, %s7, [#allocation4], 64, 64, 4
    $region49: #{tpu_custom_call.1} parent=1 // pred_fallthru
      _
    // Predicated region
    $region50: #{tpu_custom_call.1} parent=1 // pred_check
      _
    $region51: #{tpu_custom_call.1} parent=1 // pred_check_branch
      %491 = sbr.rel (0) target = $region53
    $region52: #{tpu_custom_call.1} parent=1 // pred_region
      _
    $region53: #{tpu_custom_call.1} parent=1 // pred_fallthru
      _
    // Predicated region
    $region54: #{tpu_custom_call.1} parent=1 // pred_check
      _
    $region55: #{tpu_custom_call.1} parent=1 // pred_check_branch
      %493 = sbr.rel (0) target = $region57
    $region56: #{tpu_custom_call.1} parent=1 // pred_region
      %494 = dma.done [#allocation4], 128
    $region57: #{tpu_custom_call.1} parent=1 // pred_fallthru
      _
    // Predicated region
    $region58: #{tpu_custom_call.1} parent=1 // pred_check
      _
    $region59: #{tpu_custom_call.1} parent=1 // pred_check_branch
      %496 = sbr.rel (0) target = $region61
    $region60: #{tpu_custom_call.1} parent=1 // pred_region
      _
    $region61: #{tpu_custom_call.1} parent=1 // pred_fallthru
      _
    %497 = vsyncpa [#allocation3], 1
    %498 = vsyncpa [#allocation6], 1
    %499 = vsyncpa [#allocation9], 1
    %500 = vsyncpa [#allocation4], 1

</llo_original>
